<compile_context>
chip_gen: v7x
topology: tpu7x:2x2x1
jax: 0.10.0
libtpu: 0.0.40
codegen_flags: <defaults>
</compile_context>

<pallas_src>
import math

import jax
import jax.numpy as jnp
from jax import lax
from jax.experimental import pallas as pl
from jax.experimental.pallas import tpu as pltpu


def _make_upsample_conv_kernel(C, L, bpt, compute_dtype):
    """Kernel over one batch-group tile.

    Block shapes: x (bpt, C, L), E (L, 2L), W (C, 3C), b (C, 1) f32,
    out (bpt, C, 2L). The nearest-2x upsample is an exact 0/1 expansion matmul
    (u = x @ E), so the conv is applied to the already-interleaved signal and
    the kernel writes the final (N, C, 2L) layout directly — no wrapper-side
    interleave/transpose passes are needed.
    """
    two_l = 2 * L

    def kernel(x_ref, e_ref, w_ref, b_ref, o_ref):
        e = e_ref[...]                         # (L, 2L)  0/1 expansion, compute dtype
        w = w_ref[...]                         # (C, 3C)  = [w0 | w1 | w2]
        b = b_ref[...]                         # (C, 1)   f32 bias

        # Loop-invariant edge masks / constants (hoisted out of the batch loop).
        lane = lax.broadcasted_iota(jnp.int32, (C, two_l), 1)
        left_edge = lane == 0
        right_edge = lane == two_l - 1
        zero = jnp.zeros((C, two_l), compute_dtype)

        def process(bi):
            x = x_ref[bi].astype(compute_dtype)                       # (C, L)
            # Nearest-2x upsample on the lane axis via MXU (exact: E is 0/1).
            u = jnp.dot(x, e, preferred_element_type=jnp.float32)     # (C, 2L)
            u = u.astype(compute_dtype)
            # u_prev[:, j] = u[:, j-1], zero pad at j == 0.
            u_prev = jnp.where(left_edge, zero, pltpu.roll(u, shift=1, axis=1))
            # u_next[:, j] = u[:, j+1]; shift 2L-1 (non-negative) == shift -1;
            # zero pad at j == 2L-1.
            u_next = jnp.where(right_edge, zero,
                               pltpu.roll(u, shift=two_l - 1, axis=1))
            stack = jnp.concatenate([u_prev, u, u_next], axis=0)      # (3C, 2L)
            acc = jnp.dot(w, stack, preferred_element_type=jnp.float32) + b
            o_ref[bi] = acc.astype(o_ref.dtype)                       # (C, 2L)

        if bpt <= 8:
            # Short fixed trip-count: static unroll keeps scheduler visibility.
            for bi in range(bpt):
                process(bi)
        else:
            def body(bi, carry):
                process(bi)
                return carry
            lax.fori_loop(0, bpt, body, None)

    return kernel


def upsample_forward(x, weight=None, bias=None, *, use_conv,
                     compute_dtype=jnp.bfloat16, batches_per_tile=None):
    """Pallas forward of FedDISC `Upsample`.

    x: (N, C, L). weight: (C, C, 3) torch Conv1d OIW layout. bias: (C,).
    Returns (N, C, 2L).
    """
    N, C, L = x.shape

    if not use_conv:
        # Pure nearest-2x duplication: zero compute, HBM-bound — plain XLA hits
        # the roofline directly; a Pallas kernel only adds overhead.
        return jnp.repeat(x, 2, axis=2)

    # ---- parameter glue (tiny, done once) -----------------------------------
    # Conv taps as one slab: out = w0 @ u_prev + w1 @ u + w2 @ u_next.
    w3 = jnp.concatenate(
        [weight[:, :, 0], weight[:, :, 1], weight[:, :, 2]],
        axis=1).astype(compute_dtype)                                  # (C, 3C)
    b2 = bias.reshape(C, 1).astype(jnp.float32)                        # (C, 1)
    # Nearest-2x expansion matrix: E[i, 2i] = E[i, 2i+1] = 1.
    col = jnp.arange(2 * L)[None, :]
    row = jnp.arange(L)[:, None]
    e = (col // 2 == row).astype(compute_dtype)                        # (L, 2L)
    # TODO(synk): for very long L, tile the spatial axis with halo columns
    # instead of keeping whole-L tiles and the O(L^2) expansion matrix in VMEM.

    # ---- tiling: group batches so each grid step moves >= ~128K elements ----
    if batches_per_tile is None:
        per_batch = max(C * L, 1)
        target = max(1, min(N, (1 << 17) // per_batch))
        batches_per_tile = 1
        for cand in range(target, 0, -1):
            if N % cand == 0:
                batches_per_tile = cand
                break
    assert N % batches_per_tile == 0
    bpt = batches_per_tile
    grid_n = N // bpt

    return pl.pallas_call(
        _make_upsample_conv_kernel(C, L, bpt, compute_dtype),
        out_shape=jax.ShapeDtypeStruct((N, C, 2 * L), x.dtype),
        grid=(grid_n,),
        in_specs=[
            pl.BlockSpec((bpt, C, L), lambda i: (i, 0, 0)),      # activations
            pl.BlockSpec((L, 2 * L), lambda i: (0, 0)),          # expansion (resident)
            pl.BlockSpec((C, 3 * C), lambda i: (0, 0)),          # taps (resident)
            pl.BlockSpec((C, 1), lambda i: (0, 0)),              # bias f32 (resident)
        ],
        out_specs=pl.BlockSpec((bpt, C, 2 * L), lambda i: (i, 0, 0)),
        compiler_params=pltpu.CompilerParams(
            dimension_semantics=("parallel",)),                  # megacore sharding
    )(x, e, w3, b2)


def _reference(x, weight, bias, use_conv):
    up = jnp.repeat(x, 2, axis=2)
    if not use_conv:
        return up
    y = lax.conv_general_dilated(
        up, weight, window_strides=(1,), padding=((1, 1),),
        dimension_numbers=("NCH", "OIH", "NCH"))
    return y + bias[None, :, None]


if __name__ == "__main__":
    N, C, L = 2, 8, 16  # small shapes consistent with Conv1d(channels, channels, 3, padding=1)

    key = jax.random.PRNGKey(0)
    kx, kw, kb = jax.random.split(key, 3)
    x = jax.random.normal(kx, (N, C, L), dtype=jnp.float32)

    # Deterministic Conv1d-style init (uniform +/- 1/sqrt(fan_in)), no checkpoint load.
    fan_in = C * 3
    bound = 1.0 / math.sqrt(fan_in)
    weight = jax.random.uniform(kw, (C, C, 3), jnp.float32, -bound, bound)
    bias = jax.random.uniform(kb, (C,), jnp.float32, -bound, bound)

    ref_conv = _reference(x, weight, bias, use_conv=True)
    ref_noconv = _reference(x, weight, bias, use_conv=False)

    # f32-operand path: structural check of the upsample-by-matmul + conv fusion.
    out_f32 = upsample_forward(x, weight, bias, use_conv=True,
                               compute_dtype=jnp.float32)
    jax.block_until_ready(out_f32)
    assert out_f32.shape == (N, C, 2 * L)
    assert jnp.allclose(out_f32, ref_conv, atol=2e-2, rtol=2e-2)

    # bf16-operand fast path (default): loose tolerance vs f32 reference.
    out_bf16 = upsample_forward(x, weight, bias, use_conv=True)
    jax.block_until_ready(out_bf16)
    assert out_bf16.shape == (N, C, 2 * L)
    assert jnp.allclose(out_bf16, ref_conv, atol=5e-2, rtol=5e-2)

    # use_conv=False path (plain XLA nearest-2x duplication).
    out_noconv = upsample_forward(x, use_conv=False)
    jax.block_until_ready(out_noconv)
    assert out_noconv.shape == (N, C, 2 * L)
    assert jnp.allclose(out_noconv, ref_noconv)

    print("KERNEL_OK")
</pallas_src>

<mosaic_0001>
module attributes {stable_mosaic.version = 11 : i64} {
  func.func @kernel(%arg0: i32, %arg1: memref<2x8x16xf32, #tpu.memory_space<vmem>>, %arg2: memref<16x32xf32, #tpu.memory_space<vmem>>, %arg3: memref<8x24xf32, #tpu.memory_space<vmem>>, %arg4: memref<8x1xf32, #tpu.memory_space<vmem>>, %arg5: memref<2x8x32xf32, #tpu.memory_space<vmem>>) attributes {dimension_semantics = [#tpu.dimension_semantics<parallel>], iteration_bounds = array<i64: 1>, scalar_prefetch = 0 : i64, scratch_operands = 0 : i64, tpu.core_type = #tpu.core_type<tc>, window_params = [{transform_indices = @transform_0, window_bounds = array<i64: 2, 8, 16>}, {pipeline_mode = #tpu.pipeline_mode<synchronous>, transform_indices = @transform_1, window_bounds = array<i64: 16, 32>}, {pipeline_mode = #tpu.pipeline_mode<synchronous>, transform_indices = @transform_2, window_bounds = array<i64: 8, 24>}, {pipeline_mode = #tpu.pipeline_mode<synchronous>, transform_indices = @transform_3, window_bounds = array<i64: 8, 1>}, {transform_indices = @transform_4, window_bounds = array<i64: 2, 8, 32>}]} {
    %c0 = arith.constant 0 : index
    %c0_0 = arith.constant 0 : index
    %0 = vector.load %arg2[%c0, %c0_0] : memref<16x32xf32, #tpu.memory_space<vmem>>, vector<16x32xf32>
    %c0_1 = arith.constant 0 : index
    %c0_2 = arith.constant 0 : index
    %1 = vector.load %arg3[%c0_1, %c0_2] : memref<8x24xf32, #tpu.memory_space<vmem>>, vector<8x24xf32>
    %c0_3 = arith.constant 0 : index
    %c0_4 = arith.constant 0 : index
    %2 = vector.load %arg4[%c0_3, %c0_4] : memref<8x1xf32, #tpu.memory_space<vmem>>, vector<8x1xf32>
    %3 = tpu.iota {dimensions = array<i32: 1>} : vector<8x32xi32>
    %c0_i32 = arith.constant 0 : i32
    %4 = vector.broadcast %c0_i32 : i32 to vector<8x32xi32>
    %5 = arith.cmpi eq, %3, %4 : vector<8x32xi32>
    %c31_i32 = arith.constant 31 : i32
    %6 = vector.broadcast %c31_i32 : i32 to vector<8x32xi32>
    %7 = arith.cmpi eq, %3, %6 : vector<8x32xi32>
    %cst = arith.constant 0.000000e+00 : f32
    %8 = vector.broadcast %cst : f32 to vector<8x32xf32>
    %c0_5 = arith.constant 0 : index
    %c0_6 = arith.constant 0 : index
    %c0_7 = arith.constant 0 : index
    %9 = vector.load %arg1[%c0_5, %c0_6, %c0_7] : memref<2x8x16xf32, #tpu.memory_space<vmem>>, vector<1x8x16xf32>
    %10 = vector.shape_cast %9 : vector<1x8x16xf32> to vector<8x16xf32>
    %cst_8 = arith.constant dense<0.000000e+00> : vector<8x32xf32>
    %11 = tpu.matmul %10, %0, %cst_8 {dimension_numbers = #tpu.dot_dimension_numbers<[1], [0], [0], [1], [0, 0, 1, 1], [], []>} : vector<8x16xf32>, vector<16x32xf32>, vector<8x32xf32> -> vector<8x32xf32>
    %c1_i32 = arith.constant 1 : i32
    %12 = tpu.dynamic_rotate %11 by %c1_i32 dim 1 : vector<8x32xf32>, i32 -> vector<8x32xf32>
    %13 = arith.select %5, %8, %12 : vector<8x32xi1>, vector<8x32xf32>
    %c31_i32_9 = arith.constant 31 : i32
    %14 = tpu.dynamic_rotate %11 by %c31_i32_9 dim 1 : vector<8x32xf32>, i32 -> vector<8x32xf32>
    %15 = arith.select %7, %8, %14 : vector<8x32xi1>, vector<8x32xf32>
    %16 = tpu.concatenate %13, %11, %15 in 0 : vector<8x32xf32>, vector<8x32xf32>, vector<8x32xf32> -> vector<24x32xf32>
    %cst_10 = arith.constant dense<0.000000e+00> : vector<8x32xf32>
    %17 = tpu.matmul %1, %16, %cst_10 {dimension_numbers = #tpu.dot_dimension_numbers<[1], [0], [0], [1], [0, 0, 1, 1], [], []>} : vector<8x24xf32>, vector<24x32xf32>, vector<8x32xf32> -> vector<8x32xf32>
    %18 = vector.broadcast %2 : vector<8x1xf32> to vector<8x32xf32>
    %19 = arith.addf %17, %18 : vector<8x32xf32>
    %c0_11 = arith.constant 0 : index
    %c0_12 = arith.constant 0 : index
    %c0_13 = arith.constant 0 : index
    %20 = vector.load %arg5[%c0_11, %c0_12, %c0_13] : memref<2x8x32xf32, #tpu.memory_space<vmem>>, vector<1x8x32xf32>
    %21 = vector.shape_cast %20 : vector<1x8x32xf32> to vector<8x32xf32>
    %22 = vector.shape_cast %19 : vector<8x32xf32> to vector<1x8x32xf32>
    tpu.vector_store %arg5[%c0_11, %c0_12, %c0_13], %22 {strides = array<i32>} : memref<2x8x32xf32, #tpu.memory_space<vmem>>, vector<1x8x32xf32>,
    %c1 = arith.constant 1 : index
    %c0_14 = arith.constant 0 : index
    %c0_15 = arith.constant 0 : index
    %23 = vector.load %arg1[%c1, %c0_14, %c0_15] : memref<2x8x16xf32, #tpu.memory_space<vmem>>, vector<1x8x16xf32>
    %24 = vector.shape_cast %23 : vector<1x8x16xf32> to vector<8x16xf32>
    %cst_16 = arith.constant dense<0.000000e+00> : vector<8x32xf32>
    %25 = tpu.matmul %24, %0, %cst_16 {dimension_numbers = #tpu.dot_dimension_numbers<[1], [0], [0], [1], [0, 0, 1, 1], [], []>} : vector<8x16xf32>, vector<16x32xf32>, vector<8x32xf32> -> vector<8x32xf32>
    %c1_i32_17 = arith.constant 1 : i32
    %26 = tpu.dynamic_rotate %25 by %c1_i32_17 dim 1 : vector<8x32xf32>, i32 -> vector<8x32xf32>
    %27 = arith.select %5, %8, %26 : vector<8x32xi1>, vector<8x32xf32>
    %c31_i32_18 = arith.constant 31 : i32
    %28 = tpu.dynamic_rotate %25 by %c31_i32_18 dim 1 : vector<8x32xf32>, i32 -> vector<8x32xf32>
    %29 = arith.select %7, %8, %28 : vector<8x32xi1>, vector<8x32xf32>
    %30 = tpu.concatenate %27, %25, %29 in 0 : vector<8x32xf32>, vector<8x32xf32>, vector<8x32xf32> -> vector<24x32xf32>
    %cst_19 = arith.constant dense<0.000000e+00> : vector<8x32xf32>
    %31 = tpu.matmul %1, %30, %cst_19 {dimension_numbers = #tpu.dot_dimension_numbers<[1], [0], [0], [1], [0, 0, 1, 1], [], []>} : vector<8x24xf32>, vector<24x32xf32>, vector<8x32xf32> -> vector<8x32xf32>
    %32 = vector.broadcast %2 : vector<8x1xf32> to vector<8x32xf32>
    %33 = arith.addf %31, %32 : vector<8x32xf32>
    %c1_20 = arith.constant 1 : index
    %c0_21 = arith.constant 0 : index
    %c0_22 = arith.constant 0 : index
    %34 = vector.load %arg5[%c1_20, %c0_21, %c0_22] : memref<2x8x32xf32, #tpu.memory_space<vmem>>, vector<1x8x32xf32>
    %35 = vector.shape_cast %34 : vector<1x8x32xf32> to vector<8x32xf32>
    %36 = vector.shape_cast %33 : vector<8x32xf32> to vector<1x8x32xf32>
    tpu.vector_store %arg5[%c1_20, %c0_21, %c0_22], %36 {strides = array<i32>} : memref<2x8x32xf32, #tpu.memory_space<vmem>>, vector<1x8x32xf32>,
    return
  }
  func.func @transform_0(%arg0: i32) -> (i32, i32, i32) {
    %c0_i32 = arith.constant 0 : i32
    %c0_i32_0 = arith.constant 0 : i32
    %c0_i32_1 = arith.constant 0 : i32
    return %arg0, %c0_i32, %c0_i32_0 : i32, i32, i32
  }
  func.func @transform_1(%arg0: i32) -> (i32, i32) {
    %c0_i32 = arith.constant 0 : i32
    %c0_i32_0 = arith.constant 0 : i32
    %c0_i32_1 = arith.constant 0 : i32
    return %c0_i32, %c0_i32_0 : i32, i32
  }
  func.func @transform_2(%arg0: i32) -> (i32, i32) {
    %c0_i32 = arith.constant 0 : i32
    %c0_i32_0 = arith.constant 0 : i32
    %c0_i32_1 = arith.constant 0 : i32
    return %c0_i32, %c0_i32_0 : i32, i32
  }
  func.func @transform_3(%arg0: i32) -> (i32, i32) {
    %c0_i32 = arith.constant 0 : i32
    %c0_i32_0 = arith.constant 0 : i32
    %c0_i32_1 = arith.constant 0 : i32
    return %c0_i32, %c0_i32_0 : i32, i32
  }
  func.func @transform_4(%arg0: i32) -> (i32, i32, i32) {
    %c0_i32 = arith.constant 0 : i32
    %c0_i32_0 = arith.constant 0 : i32
    %c0_i32_1 = arith.constant 0 : i32
    return %arg0, %c0_i32, %c0_i32_0 : i32, i32, i32
  }
}

</mosaic_0001>

<llo_original>
// kernel: tpu_custom_call.1
$region0: #{tpu_custom_call.1}
  #allocation0 [shape = 'u32[]', space=smem, size = 0x4, offset = 0x4, fixed_abs, tag = 'smem constant byte address 0x4 - core index']
  #allocation1 [shape = 'u32[144,128]{1,0:T(1,128)}', space=vmem, size = 0x12000, scoped, tag = 'internal scratch']
  %s0 = inlined_call_operand.hbm [shape: f32[2,8,16], index: 0, kind: input, shape index: {}]
  %s1 = inlined_call_operand.hbm [shape: f32[16,32], index: 1, kind: input, shape index: {}]
  %s2 = inlined_call_operand.vmem [shape: f32[8,24], index: 2, kind: input, shape index: {}]
  %s3 = inlined_call_operand.vmem [shape: f32[8,1], index: 3, kind: input, shape index: {}]
  %s4 = inlined_call_operand.hbm [shape: f32[2,8,32], index: 4, kind: output, shape index: {}]
  %s5 = sld [smem:[#allocation0]]
  $region34: #{tpu_custom_call.1} parent=0
    _
  %s7 = ssub.s32 1, %s5
  %s8 = scalar_select 0, %s7, %s5
  $region1: #{tpu_custom_call.1} parent=0
    #allocation2 [shape = 'u8[8192]{0}', space=vmem, size = 0x2000, scoped, tag = 'input window, operand 0, single buffered']
    #allocation3 [shape = 's32[1]{0}', space=sflag, size = 0x4, scoped, tag = 'scoped memory for tpu_custom_call.1']
    #allocation4 [shape = 's32[1]{0}', space=sflag, size = 0x4, scoped, tag = 'scoped memory for tpu_custom_call.1']
    #allocation5 [shape = 'u8[8192]{0}', space=vmem, size = 0x2000, scoped, tag = 'input window, operand 1, single buffered']
    #allocation6 [shape = 's32[1]{0}', space=sflag, size = 0x4, scoped, tag = 'scoped memory for tpu_custom_call.1']
    #allocation7 [shape = 'u8[8192]{0}', space=vmem, size = 0x2000, scoped, tag = 'output window, operand 0, single buffered']
    %9 = vsyncpa [#allocation3], 0
    %10 = vsyncpa [#allocation6], 0
    %11 = vsyncpa [#allocation4], 0
    // Predicated region
    $region2: #{tpu_custom_call.1} parent=1 // pred_check
      _
    $region3: #{tpu_custom_call.1} parent=1 // pred_check_branch
      %13 = sbr.rel (0) target = $region5
    $region4: #{tpu_custom_call.1} parent=1 // pred_region
      %s15 = ssub.s32 256, 256
      %16 = vsyncadd [#allocation3], %s15
      %s17 = sshll.u32 [#allocation2], 4
      %s18 = int_to_ptr.vmem [resolvable:$true] %s17
      %23 = dma.hbm_to_vmem [thread:$0]  %s0, 256, %s18, [#allocation3], 128, 128, 8
    $region5: #{tpu_custom_call.1} parent=1 // pred_fallthru
      _
    // Predicated region
    $region6: #{tpu_custom_call.1} parent=1 // pred_check
      _
    $region7: #{tpu_custom_call.1} parent=1 // pred_check_branch
      %25 = sbr.rel (0) target = $region9
    $region8: #{tpu_custom_call.1} parent=1 // pred_region
      %s27 = ssub.s32 256, 256
      %28 = vsyncadd [#allocation6], %s27
      %s29 = sshll.u32 [#allocation5], 4
      %s30 = int_to_ptr.vmem [resolvable:$true] %s29
      %35 = dma.hbm_to_vmem [thread:$0]  %s1, 256, %s30, [#allocation6], 128, 128, 8
    $region9: #{tpu_custom_call.1} parent=1 // pred_fallthru
      _
    // Predicated region
    $region10: #{tpu_custom_call.1} parent=1 // pred_check
      _
    $region11: #{tpu_custom_call.1} parent=1 // pred_check_branch
      %37 = sbr.rel (0) target = $region13
    $region12: #{tpu_custom_call.1} parent=1 // pred_region
      _
    $region13: #{tpu_custom_call.1} parent=1 // pred_fallthru
      _
    // Predicated region
    $region14: #{tpu_custom_call.1} parent=1 // pred_check
      _
    $region15: #{tpu_custom_call.1} parent=1 // pred_check_branch
      %39 = sbr.rel (0) target = $region17
    $region16: #{tpu_custom_call.1} parent=1 // pred_region
      _
    $region17: #{tpu_custom_call.1} parent=1 // pred_fallthru
      _
    // Predicated region
    $region18: #{tpu_custom_call.1} parent=1 // pred_check
      _
    $region19: #{tpu_custom_call.1} parent=1 // pred_check_branch
      %41 = sbr.rel (0) target = $region21
    $region20: #{tpu_custom_call.1} parent=1 // pred_region
      %42 = dma.done [#allocation3], 256
    $region21: #{tpu_custom_call.1} parent=1 // pred_fallthru
      _
    // Predicated region
    $region22: #{tpu_custom_call.1} parent=1 // pred_check
      _
    $region23: #{tpu_custom_call.1} parent=1 // pred_check_branch
      %44 = sbr.rel (0) target = $region25
    $region24: #{tpu_custom_call.1} parent=1 // pred_region
      %45 = dma.done [#allocation6], 256
    $region25: #{tpu_custom_call.1} parent=1 // pred_fallthru
      _
    %v46 = vld [vmem:[#allocation5] sm:$0xff]
    %v47 = vld [vmem:[#allocation5 + $0x8] sm:$0xff]
    %v48 = vld [vmem:[%s2] sm:$0xff]
    %v49 = vld [vmem:[%s3] sm:$0xff]
    %v50 = vlaneseq
    %v51 = vand.u32 %v50, 127
    %vm52 = vcmp.eq.s32.totalorder %v51, 0
    %vm53 = vcmp.eq.s32.totalorder %v51, 31
    %v54 = vld [vmem:[#allocation2] sm:$0xff]
    %vm55 = vcmask 130048
    %v57 = vsel %vm55, %v54, 0
    %59 = vmatprep.subr.mxu0 0.0
    %60 = vmatpush1.msra.mxu0 %v46
    %61 = vmatprep.subr.mxu0 0.0
    %62 = vmatpush1.msra.mxu0 %v47
    %63 = vmatprep.subr.mxu0 0.0
    %64 = vmatpush1.msra.mxu0 0.0
    %65 = vmatprep.subr.mxu0 0.0
    %66 = vmatpush1.msra.mxu0 0.0
    %67 = vmatprep.subr.mxu0 0.0
    %68 = vmatpush1.msra.mxu0 0.0
    %69 = vmatprep.subr.mxu0 0.0
    %70 = vmatpush1.msra.mxu0 0.0
    %71 = vmatprep.subr.mxu0 0.0
    %72 = vmatpush1.msra.mxu0 0.0
    %73 = vmatprep.subr.mxu0 0.0
    %74 = vmatpush1.msra.mxu0 0.0
    %75 = vmatprep.subr.mxu0 0.0
    %76 = vmatpush1.msra.mxu0 0.0
    %77 = vmatprep.subr.mxu0 0.0
    %78 = vmatpush1.msra.mxu0 0.0
    %79 = vmatprep.subr.mxu0 0.0
    %80 = vmatpush1.msra.mxu0 0.0
    %81 = vmatprep.subr.mxu0 0.0
    %82 = vmatpush1.msra.mxu0 0.0
    %83 = vmatprep.subr.mxu0 0.0
    %84 = vmatpush1.msra.mxu0 0.0
    %85 = vmatprep.subr.mxu0 0.0
    %86 = vmatpush1.msra.mxu0 0.0
    %87 = vmatprep.subr.mxu0 0.0
    %88 = vmatpush1.msra.mxu0 0.0
    %89 = vmatprep.subr.mxu0 0.0
    %90 = vmatpush1.msra.mxu0 0.0
    %91 = vmatprep.subr.mxu0 0.0
    %92 = vmatpush1.msra.mxu0 0.0
    %93 = vmatprep.subr.mxu0 0.0
    %94 = vmatpush1.msra.mxu0 0.0
    %95 = vmatprep.subr.mxu0 0.0
    %96 = vmatpush1.msra.mxu0 0.0
    %97 = vmatprep.subr.mxu0 0.0
    %98 = vmatpush1.msra.mxu0 0.0
    %99 = vmatprep.subr.mxu0 0.0
    %100 = vmatpush1.msra.mxu0 0.0
    %101 = vmatprep.subr.mxu0 0.0
    %102 = vmatpush1.msra.mxu0 0.0
    %103 = vmatprep.subr.mxu0 0.0
    %104 = vmatpush1.msra.mxu0 0.0
    %105 = vmatprep.subr.mxu0 0.0
    %106 = vmatpush1.msra.mxu0 0.0
    %107 = vmatprep.subr.mxu0 0.0
    %108 = vmatpush1.msra.mxu0 0.0
    %109 = vmatprep.subr.mxu0 0.0
    %110 = vmatpush1.msra.mxu0 0.0
    %111 = vmatprep.subr.mxu0 0.0
    %112 = vmatpush1.msra.mxu0 0.0
    %113 = vmatprep.subr.mxu0 0.0
    %114 = vmatpush1.msra.mxu0 0.0
    %115 = vmatprep.subr.mxu0 0.0
    %116 = vmatpush1.msra.mxu0 0.0
    %117 = vmatprep.subr.mxu0 0.0
    %118 = vmatpush1.msra.mxu0 0.0
    %119 = vmatprep.subr.mxu0 0.0
    %120 = vmatpush1.msra.mxu0 0.0
    %121 = vmatprep.subr.mxu0 0.0
    %122 = vmatpush1.msra.mxu0 0.0
    %123 = vmatprep.mubr.f32.mxu0 0.0
    %124 = vmatmul.mubr.f32.gmra.mrb[0].mxu0 %v57
    %v125 = vpop.f32.mrb[0].mxu0
    %v126 = vadd.f32 0.0, %v125
    %v127 = vpop.f32.mrb[0].mxu0
    %128 = vdwg.mxu0
    %vm129 = vcmask 1047808
    %130 = vrot.lane.b32.xlu0 %v126, 32
    %v131 = vpop.permute.xlu0 %130
    %v132 = vsel %vm129, %v131, %v126
    %133 = vrot.lane.b32.xlu0 %v132, 32
    %v134 = vpop.permute.xlu0 %133
    %v135 = vsel %vm129, %v134, %v126
    %137 = vrot.lane.b32.xlu0 %v135, 97
    %v138 = vpop.permute.xlu0 %137
    %v140 = vsel %vm52, 0.0, %v138
    %141 = vrot.lane.b32.xlu0 %v135, 127
    %v142 = vpop.permute.xlu0 %141
    %v144 = vsel %vm53, 0.0, %v142
    %146 = vset.pattern.permute.xlu0 0
    %147 = vperm.xlu0 %146, %v49
    %v148 = vpop.permute.xlu0 %147
    %vm150 = vcmask 195584
    %v152 = vsel %vm150, %v48, 0
    %154 = vmatprep.subr.mxu0 0.0
    %155 = vmatpush1.msra.mxu0 %v140
    %156 = vmatprep.subr.mxu0 0.0
    %157 = vmatpush1.msra.mxu0 %v126
    %158 = vmatprep.subr.mxu0 0.0
    %159 = vmatpush1.msra.mxu0 %v144
    %160 = vmatprep.subr.mxu0 0.0
    %161 = vmatpush1.msra.mxu0 0.0
    %162 = vmatprep.subr.mxu0 0.0
    %163 = vmatpush1.msra.mxu0 0.0
    %164 = vmatprep.subr.mxu0 0.0
    %165 = vmatpush1.msra.mxu0 0.0
    %166 = vmatprep.subr.mxu0 0.0
    %167 = vmatpush1.msra.mxu0 0.0
    %168 = vmatprep.subr.mxu0 0.0
    %169 = vmatpush1.msra.mxu0 0.0
    %170 = vmatprep.subr.mxu0 0.0
    %171 = vmatpush1.msra.mxu0 0.0
    %172 = vmatprep.subr.mxu0 0.0
    %173 = vmatpush1.msra.mxu0 0.0
    %174 = vmatprep.subr.mxu0 0.0
    %175 = vmatpush1.msra.mxu0 0.0
    %176 = vmatprep.subr.mxu0 0.0
    %177 = vmatpush1.msra.mxu0 0.0
    %178 = vmatprep.subr.mxu0 0.0
    %179 = vmatpush1.msra.mxu0 0.0
    %180 = vmatprep.subr.mxu0 0.0
    %181 = vmatpush1.msra.mxu0 0.0
    %182 = vmatprep.subr.mxu0 0.0
    %183 = vmatpush1.msra.mxu0 0.0
    %184 = vmatprep.subr.mxu0 0.0
    %185 = vmatpush1.msra.mxu0 0.0
    %186 = vmatprep.subr.mxu0 0.0
    %187 = vmatpush1.msra.mxu0 0.0
    %188 = vmatprep.subr.mxu0 0.0
    %189 = vmatpush1.msra.mxu0 0.0
    %190 = vmatprep.subr.mxu0 0.0
    %191 = vmatpush1.msra.mxu0 0.0
    %192 = vmatprep.subr.mxu0 0.0
    %193 = vmatpush1.msra.mxu0 0.0
    %194 = vmatprep.subr.mxu0 0.0
    %195 = vmatpush1.msra.mxu0 0.0
    %196 = vmatprep.subr.mxu0 0.0
    %197 = vmatpush1.msra.mxu0 0.0
    %198 = vmatprep.subr.mxu0 0.0
    %199 = vmatpush1.msra.mxu0 0.0
    %200 = vmatprep.subr.mxu0 0.0
    %201 = vmatpush1.msra.mxu0 0.0
    %202 = vmatprep.subr.mxu0 0.0
    %203 = vmatpush1.msra.mxu0 0.0
    %204 = vmatprep.subr.mxu0 0.0
    %205 = vmatpush1.msra.mxu0 0.0
    %206 = vmatprep.subr.mxu0 0.0
    %207 = vmatpush1.msra.mxu0 0.0
    %208 = vmatprep.subr.mxu0 0.0
    %209 = vmatpush1.msra.mxu0 0.0
    %210 = vmatprep.subr.mxu0 0.0
    %211 = vmatpush1.msra.mxu0 0.0
    %212 = vmatprep.subr.mxu0 0.0
    %213 = vmatpush1.msra.mxu0 0.0
    %214 = vmatprep.subr.mxu0 0.0
    %215 = vmatpush1.msra.mxu0 0.0
    %216 = vmatprep.subr.mxu0 0.0
    %217 = vmatpush1.msra.mxu0 0.0
    %218 = vmatprep.mubr.f32.mxu0 0.0
    %219 = vmatmul.mubr.f32.gmra.mrb[0].mxu0 %v152
    %v220 = vpop.f32.mrb[0].mxu0
    %v221 = vadd.f32 %v148, %v220
    %v222 = vpop.f32.mrb[0].mxu0
    %223 = vdwg.mxu0
    %vm224 = vcmask 261120
    %225 = vst.msk [vmem:[#allocation7] sm:$0xff] %vm224, %v221
    %s226 = scalar_lea.vmem [#allocation2], 8
    %v227 = vld [vmem:[%s226] sm:$0xff]
    %v229 = vsel %vm55, %v227, 0
    %231 = vmatprep.subr.mxu0 0.0
    %232 = vmatpush1.msra.mxu0 %v46
    %233 = vmatprep.subr.mxu0 0.0
    %234 = vmatpush1.msra.mxu0 %v47
    %235 = vmatprep.subr.mxu0 0.0
    %236 = vmatpush1.msra.mxu0 0.0
    %237 = vmatprep.subr.mxu0 0.0
    %238 = vmatpush1.msra.mxu0 0.0
    %239 = vmatprep.subr.mxu0 0.0
    %240 = vmatpush1.msra.mxu0 0.0
    %241 = vmatprep.subr.mxu0 0.0
    %242 = vmatpush1.msra.mxu0 0.0
    %243 = vmatprep.subr.mxu0 0.0
    %244 = vmatpush1.msra.mxu0 0.0
    %245 = vmatprep.subr.mxu0 0.0
    %246 = vmatpush1.msra.mxu0 0.0
    %247 = vmatprep.subr.mxu0 0.0
    %248 = vmatpush1.msra.mxu0 0.0
    %249 = vmatprep.subr.mxu0 0.0
    %250 = vmatpush1.msra.mxu0 0.0
    %251 = vmatprep.subr.mxu0 0.0
    %252 = vmatpush1.msra.mxu0 0.0
    %253 = vmatprep.subr.mxu0 0.0
    %254 = vmatpush1.msra.mxu0 0.0
    %255 = vmatprep.subr.mxu0 0.0
    %256 = vmatpush1.msra.mxu0 0.0
    %257 = vmatprep.subr.mxu0 0.0
    %258 = vmatpush1.msra.mxu0 0.0
    %259 = vmatprep.subr.mxu0 0.0
    %260 = vmatpush1.msra.mxu0 0.0
    %261 = vmatprep.subr.mxu0 0.0
    %262 = vmatpush1.msra.mxu0 0.0
    %263 = vmatprep.subr.mxu0 0.0
    %264 = vmatpush1.msra.mxu0 0.0
    %265 = vmatprep.subr.mxu0 0.0
    %266 = vmatpush1.msra.mxu0 0.0
    %267 = vmatprep.subr.mxu0 0.0
    %268 = vmatpush1.msra.mxu0 0.0
    %269 = vmatprep.subr.mxu0 0.0
    %270 = vmatpush1.msra.mxu0 0.0
    %271 = vmatprep.subr.mxu0 0.0
    %272 = vmatpush1.msra.mxu0 0.0
    %273 = vmatprep.subr.mxu0 0.0
    %274 = vmatpush1.msra.mxu0 0.0
    %275 = vmatprep.subr.mxu0 0.0
    %276 = vmatpush1.msra.mxu0 0.0
    %277 = vmatprep.subr.mxu0 0.0
    %278 = vmatpush1.msra.mxu0 0.0
    %279 = vmatprep.subr.mxu0 0.0
    %280 = vmatpush1.msra.mxu0 0.0
    %281 = vmatprep.subr.mxu0 0.0
    %282 = vmatpush1.msra.mxu0 0.0
    %283 = vmatprep.subr.mxu0 0.0
    %284 = vmatpush1.msra.mxu0 0.0
    %285 = vmatprep.subr.mxu0 0.0
    %286 = vmatpush1.msra.mxu0 0.0
    %287 = vmatprep.subr.mxu0 0.0
    %288 = vmatpush1.msra.mxu0 0.0
    %289 = vmatprep.subr.mxu0 0.0
    %290 = vmatpush1.msra.mxu0 0.0
    %291 = vmatprep.subr.mxu0 0.0
    %292 = vmatpush1.msra.mxu0 0.0
    %293 = vmatprep.subr.mxu0 0.0
    %294 = vmatpush1.msra.mxu0 0.0
    %295 = vmatprep.mubr.f32.mxu0 0.0
    %296 = vmatmul.mubr.f32.gmra.mrb[0].mxu0 %v229
    %v297 = vpop.f32.mrb[0].mxu0
    %v298 = vadd.f32 0.0, %v297
    %v299 = vpop.f32.mrb[0].mxu0
    %300 = vdwg.mxu0
    %301 = vrot.lane.b32.xlu0 %v298, 32
    %v302 = vpop.permute.xlu0 %301
    %v303 = vsel %vm129, %v302, %v298
    %304 = vrot.lane.b32.xlu0 %v303, 32
    %v305 = vpop.permute.xlu0 %304
    %v306 = vsel %vm129, %v305, %v298
    %308 = vrot.lane.b32.xlu0 %v306, 97
    %v309 = vpop.permute.xlu0 %308
    %v311 = vsel %vm52, 0.0, %v309
    %312 = vrot.lane.b32.xlu0 %v306, 127
    %v313 = vpop.permute.xlu0 %312
    %v315 = vsel %vm53, 0.0, %v313
    %316 = vmatprep.subr.mxu0 0.0
    %317 = vmatpush1.msra.mxu0 %v311
    %318 = vmatprep.subr.mxu0 0.0
    %319 = vmatpush1.msra.mxu0 %v298
    %320 = vmatprep.subr.mxu0 0.0
    %321 = vmatpush1.msra.mxu0 %v315
    %322 = vmatprep.subr.mxu0 0.0
    %323 = vmatpush1.msra.mxu0 0.0
    %324 = vmatprep.subr.mxu0 0.0
    %325 = vmatpush1.msra.mxu0 0.0
    %326 = vmatprep.subr.mxu0 0.0
    %327 = vmatpush1.msra.mxu0 0.0
    %328 = vmatprep.subr.mxu0 0.0
    %329 = vmatpush1.msra.mxu0 0.0
    %330 = vmatprep.subr.mxu0 0.0
    %331 = vmatpush1.msra.mxu0 0.0
    %332 = vmatprep.subr.mxu0 0.0
    %333 = vmatpush1.msra.mxu0 0.0
    %334 = vmatprep.subr.mxu0 0.0
    %335 = vmatpush1.msra.mxu0 0.0
    %336 = vmatprep.subr.mxu0 0.0
    %337 = vmatpush1.msra.mxu0 0.0
    %338 = vmatprep.subr.mxu0 0.0
    %339 = vmatpush1.msra.mxu0 0.0
    %340 = vmatprep.subr.mxu0 0.0
    %341 = vmatpush1.msra.mxu0 0.0
    %342 = vmatprep.subr.mxu0 0.0
    %343 = vmatpush1.msra.mxu0 0.0
    %344 = vmatprep.subr.mxu0 0.0
    %345 = vmatpush1.msra.mxu0 0.0
    %346 = vmatprep.subr.mxu0 0.0
    %347 = vmatpush1.msra.mxu0 0.0
    %348 = vmatprep.subr.mxu0 0.0
    %349 = vmatpush1.msra.mxu0 0.0
    %350 = vmatprep.subr.mxu0 0.0
    %351 = vmatpush1.msra.mxu0 0.0
    %352 = vmatprep.subr.mxu0 0.0
    %353 = vmatpush1.msra.mxu0 0.0
    %354 = vmatprep.subr.mxu0 0.0
    %355 = vmatpush1.msra.mxu0 0.0
    %356 = vmatprep.subr.mxu0 0.0
    %357 = vmatpush1.msra.mxu0 0.0
    %358 = vmatprep.subr.mxu0 0.0
    %359 = vmatpush1.msra.mxu0 0.0
    %360 = vmatprep.subr.mxu0 0.0
    %361 = vmatpush1.msra.mxu0 0.0
    %362 = vmatprep.subr.mxu0 0.0
    %363 = vmatpush1.msra.mxu0 0.0
    %364 = vmatprep.subr.mxu0 0.0
    %365 = vmatpush1.msra.mxu0 0.0
    %366 = vmatprep.subr.mxu0 0.0
    %367 = vmatpush1.msra.mxu0 0.0
    %368 = vmatprep.subr.mxu0 0.0
    %369 = vmatpush1.msra.mxu0 0.0
    %370 = vmatprep.subr.mxu0 0.0
    %371 = vmatpush1.msra.mxu0 0.0
    %372 = vmatprep.subr.mxu0 0.0
    %373 = vmatpush1.msra.mxu0 0.0
    %374 = vmatprep.subr.mxu0 0.0
    %375 = vmatpush1.msra.mxu0 0.0
    %376 = vmatprep.subr.mxu0 0.0
    %377 = vmatpush1.msra.mxu0 0.0
    %378 = vmatprep.subr.mxu0 0.0
    %379 = vmatpush1.msra.mxu0 0.0
    %380 = vmatprep.mubr.f32.mxu0 0.0
    %381 = vmatmul.mubr.f32.gmra.mrb[0].mxu0 %v152
    %v382 = vpop.f32.mrb[0].mxu0
    %v383 = vadd.f32 %v148, %v382
    %v384 = vpop.f32.mrb[0].mxu0
    %385 = vdwg.mxu0
    %s386 = scalar_lea.vmem [#allocation7], 8
    %387 = vst.msk [vmem:[%s386] sm:$0xff] %vm224, %v383
    // Predicated region
    $region26: #{tpu_custom_call.1} parent=1 // pred_check
      _
    $region27: #{tpu_custom_call.1} parent=1 // pred_check_branch
      %389 = sbr.rel (0) target = $region29
    $region28: #{tpu_custom_call.1} parent=1 // pred_region
      %s391 = ssub.s32 256, 256
      %392 = vsyncadd [#allocation4], %s391
      %s393 = sshll.u32 [#allocation7], 4
      %s394 = int_to_ptr.vmem [resolvable:$true] %s393
      %399 = dma.vmem_to_hbm [thread:$0]  %s394, 256, %s4, [#allocation4], 128, 128, 8
    $region29: #{tpu_custom_call.1} parent=1 // pred_fallthru
      _
    // Predicated region
    $region30: #{tpu_custom_call.1} parent=1 // pred_check
      _
    $region31: #{tpu_custom_call.1} parent=1 // pred_check_branch
      %401 = sbr.rel (0) target = $region33
    $region32: #{tpu_custom_call.1} parent=1 // pred_region
      %402 = dma.done [#allocation4], 256
    $region33: #{tpu_custom_call.1} parent=1 // pred_fallthru
      _
    %403 = vsyncpa [#allocation3], 1
    %404 = vsyncpa [#allocation6], 1
    %405 = vsyncpa [#allocation4], 1

</llo_original>
